<compile_context>
chip_gen: v7x
topology: tpu7x:2x2x1
jax: 0.10.0
libtpu: 0.0.40
codegen_flags: <defaults>
</compile_context>

<pallas_src>
import functools
import math

import jax
import jax.numpy as jnp
from jax.experimental import pallas as pl
from jax.experimental.pallas import tpu as pltpu

HIDDEN = 256
SUBLANE = 8
MAX_TB = 1024  # max batch-tile width (lanes); multiple of 128


def _round_up(x, m):
    return (x + m - 1) // m * m


def _fused_critic_kernel(xT_ref, w1_ref, b1_ref, w2_ref, b2_ref, o_ref):
    """One (head, batch-tile) grid point of the fused Linear->ReLU->Linear.

    Shapes seen by the kernel (head dim squeezed away):
      xT: (IN, TB)   w1: (H, IN)   b1: (H, 1)
      w2: (OP, H)    b2: (OP, 1)   o:  (OP, TB)      with OP = round_up(OUT, 8)
    """
    h = jnp.dot(w1_ref[...], xT_ref[...], preferred_element_type=jnp.float32)
    h = jnp.maximum(h + b1_ref[...], 0.0)           # f32 bias + ReLU on the VPU
    h = h.astype(w2_ref.dtype)                      # bf16 feed iff weights are bf16
    y = jnp.dot(w2_ref[...], h, preferred_element_type=jnp.float32) + b2_ref[...]
    o_ref[...] = y.astype(o_ref.dtype)


def _fused_rho_critic(xT, w1, b1, w2, b2):
    """xT: (2, IN, B); w1: (2, H, IN); b1: (2, H, 1); w2: (2, OP, H); b2: (2, OP, 1)."""
    _, IN, B = xT.shape
    H = w1.shape[1]
    OP = w2.shape[1]

    if B <= MAX_TB:
        tb, b_pad = B, B                 # single full-width block, no padding
    else:
        tb = MAX_TB
        b_pad = _round_up(B, tb)
        if b_pad != B:
            xT = jnp.pad(xT, ((0, 0), (0, 0), (0, b_pad - B)))

    grid = (2, b_pad // tb)              # (head, batch_tile); head leads -> 2-TC on v7x

    out = pl.pallas_call(
        _fused_critic_kernel,
        out_shape=jax.ShapeDtypeStruct((2, OP, b_pad), jnp.float32),
        grid=grid,
        in_specs=[
            pl.BlockSpec((pl.Squeezed(), IN, tb), lambda h, b: (h, 0, b)),
            pl.BlockSpec((pl.Squeezed(), H, IN), lambda h, b: (h, 0, 0)),
            pl.BlockSpec((pl.Squeezed(), H, 1), lambda h, b: (h, 0, 0)),
            pl.BlockSpec((pl.Squeezed(), OP, H), lambda h, b: (h, 0, 0)),
            pl.BlockSpec((pl.Squeezed(), OP, 1), lambda h, b: (h, 0, 0)),
        ],
        out_specs=pl.BlockSpec((pl.Squeezed(), OP, tb), lambda h, b: (h, 0, b)),
        compiler_params=pltpu.CompilerParams(
            dimension_semantics=("parallel", "parallel"),
        ),
    )(xT, w1, b1, w2, b2)
    return out  # (2, OP, b_pad) f32


def xavier_uniform(key, out_f, in_f, dtype=jnp.float32):
    """torch.nn.init.xavier_uniform_(gain=1) on a (out_f, in_f) Linear weight."""
    limit = math.sqrt(6.0 / (in_f + out_f))
    return jax.random.uniform(key, (out_f, in_f), dtype, minval=-limit, maxval=limit)


def init_rho_critic_params(key, inp, out, hidden=HIDDEN, io_dtype=jnp.float32):
    """Pre-stacked / pre-padded params for the fused kernel (hoisted out of forward).

    Weights are in PyTorch (out_features, in_features) layout, stacked over the
    two heads (linear1/linear3 = head 0, linear4/linear6 = head 1); the output
    dim is zero-padded to a multiple of 8 sublanes once here.  Biases stay f32.
    """
    k1, k3, k4, k6 = jax.random.split(key, 4)
    op = _round_up(out, SUBLANE)
    w_l1 = xavier_uniform(k1, hidden, inp)      # linear1.weight  (H, inp)
    w_l4 = xavier_uniform(k4, hidden, inp)      # linear4.weight  (H, inp)
    w_l3 = xavier_uniform(k3, out, hidden)      # linear3.weight  (out, H)
    w_l6 = xavier_uniform(k6, out, hidden)      # linear6.weight  (out, H)
    pad = ((0, op - out), (0, 0))
    return {
        "w1": jnp.stack([w_l1, w_l4]).astype(io_dtype),                              # (2, H, inp)
        "b1": jnp.zeros((2, hidden, 1), jnp.float32),
        "w2": jnp.stack([jnp.pad(w_l3, pad), jnp.pad(w_l6, pad)]).astype(io_dtype),  # (2, op, H)
        "b2": jnp.zeros((2, op, 1), jnp.float32),
    }


@functools.partial(jax.jit, static_argnames=("out_dim",))
def rho_critic_forward(params, inp1, inp2, *, out_dim):
    """inp1, inp2: (B, IN) -> (x1, x2) each (B, out_dim)."""
    io_dtype = params["w1"].dtype
    B = inp1.shape[0]
    # Per-call path only touches activations; all weight prep was done at init.
    xT = jnp.stack([inp1.T, inp2.T]).astype(io_dtype)            # (2, IN, B)
    out = _fused_rho_critic(xT, params["w1"], params["b1"], params["w2"], params["b2"])
    x1 = out[0, :out_dim, :B].T
    x2 = out[1, :out_dim, :B].T
    return x1, x2


def rho_critic_reference(params, inp1, inp2, *, out_dim):
    """Pure-JAX f32 reference matching the PyTorch forward."""
    w1 = params["w1"].astype(jnp.float32)
    w2 = params["w2"].astype(jnp.float32)
    b1 = params["b1"][..., 0]
    b2 = params["b2"][..., 0]
    h1 = jnp.maximum(inp1 @ w1[0].T + b1[0], 0.0)
    x1 = h1 @ w2[0].T + b2[0]
    h2 = jnp.maximum(inp2 @ w1[1].T + b1[1], 0.0)
    x2 = h2 @ w2[1].T + b2[1]
    return x1[:, :out_dim], x2[:, :out_dim]


if __name__ == "__main__":
    key = jax.random.PRNGKey(0)
    kp, ka, kb = jax.random.split(key, 3)

    batch, inp_dim, out_dim = 8, 32, 4
    inp1 = jax.random.normal(ka, (batch, inp_dim), jnp.float32)
    inp2 = jax.random.normal(kb, (batch, inp_dim), jnp.float32)

    # f32 path (tight check against the pure-JAX reference).
    params = init_rho_critic_params(kp, inp_dim, out_dim, io_dtype=jnp.float32)
    x1, x2 = rho_critic_forward(params, inp1, inp2, out_dim=out_dim)
    jax.block_until_ready((x1, x2))
    r1, r2 = rho_critic_reference(params, inp1, inp2, out_dim=out_dim)
    assert x1.shape == (batch, out_dim) and x2.shape == (batch, out_dim)
    assert jnp.allclose(x1, r1, atol=1e-5, rtol=1e-5)
    assert jnp.allclose(x2, r2, atol=1e-5, rtol=1e-5)

    # bf16-I/O path (f32 accumulation) — the v6e/v7x bandwidth configuration.
    params_bf16 = init_rho_critic_params(kp, inp_dim, out_dim, io_dtype=jnp.bfloat16)
    y1, y2 = rho_critic_forward(params_bf16, inp1, inp2, out_dim=out_dim)
    jax.block_until_ready((y1, y2))
    q1, q2 = rho_critic_reference(params_bf16, inp1, inp2, out_dim=out_dim)
    assert jnp.allclose(y1, q1, atol=3e-2, rtol=3e-2)
    assert jnp.allclose(y2, q2, atol=3e-2, rtol=3e-2)

    print("KERNEL_OK")
</pallas_src>

<mosaic_0001>
module attributes {stable_mosaic.version = 11 : i64} {
  func.func @_fused_critic_kernel(%arg0: i32, %arg1: i32, %arg2: memref<1x32x8xf32, #tpu.memory_space<vmem>>, %arg3: memref<1x256x32xf32, #tpu.memory_space<vmem>>, %arg4: memref<1x256x1xf32, #tpu.memory_space<vmem>>, %arg5: memref<1x8x256xf32, #tpu.memory_space<vmem>>, %arg6: memref<1x8x1xf32, #tpu.memory_space<vmem>>, %arg7: memref<1x8x8xf32, #tpu.memory_space<vmem>>) attributes {dimension_semantics = [#tpu.dimension_semantics<parallel>, #tpu.dimension_semantics<parallel>], iteration_bounds = array<i64: 2, 1>, scalar_prefetch = 0 : i64, scratch_operands = 0 : i64, tpu.core_type = #tpu.core_type<tc>, window_params = [{transform_indices = @transform_0, window_bounds = array<i64: 1, 32, 8>}, {transform_indices = @transform_1, window_bounds = array<i64: 1, 256, 32>}, {transform_indices = @transform_2, window_bounds = array<i64: 1, 256, 1>}, {transform_indices = @transform_3, window_bounds = array<i64: 1, 8, 256>}, {transform_indices = @transform_4, window_bounds = array<i64: 1, 8, 1>}, {transform_indices = @transform_5, window_bounds = array<i64: 1, 8, 8>}]} {
    %c0 = arith.constant 0 : index
    %c0_0 = arith.constant 0 : index
    %c0_1 = arith.constant 0 : index
    %0 = vector.load %arg3[%c0, %c0_0, %c0_1] : memref<1x256x32xf32, #tpu.memory_space<vmem>>, vector<1x256x32xf32>
    %1 = vector.shape_cast %0 : vector<1x256x32xf32> to vector<256x32xf32>
    %c0_2 = arith.constant 0 : index
    %c0_3 = arith.constant 0 : index
    %c0_4 = arith.constant 0 : index
    %2 = vector.load %arg2[%c0_2, %c0_3, %c0_4] : memref<1x32x8xf32, #tpu.memory_space<vmem>>, vector<1x32x8xf32>
    %3 = vector.shape_cast %2 : vector<1x32x8xf32> to vector<32x8xf32>
    %cst = arith.constant dense<0.000000e+00> : vector<256x8xf32>
    %4 = tpu.matmul %1, %3, %cst {dimension_numbers = #tpu.dot_dimension_numbers<[1], [0], [0], [1], [0, 0, 1, 1], [], []>} : vector<256x32xf32>, vector<32x8xf32>, vector<256x8xf32> -> vector<256x8xf32>
    %c0_5 = arith.constant 0 : index
    %c0_6 = arith.constant 0 : index
    %c0_7 = arith.constant 0 : index
    %5 = vector.load %arg4[%c0_5, %c0_6, %c0_7] : memref<1x256x1xf32, #tpu.memory_space<vmem>>, vector<1x256x1xf32>
    %6 = vector.shape_cast %5 : vector<1x256x1xf32> to vector<256x1xf32>
    %7 = vector.broadcast %6 : vector<256x1xf32> to vector<256x8xf32>
    %8 = arith.addf %4, %7 : vector<256x8xf32>
    %cst_8 = arith.constant 0.000000e+00 : f32
    %9 = vector.broadcast %cst_8 : f32 to vector<256x8xf32>
    %10 = arith.maximumf %8, %9 : vector<256x8xf32>
    %c0_9 = arith.constant 0 : index
    %c0_10 = arith.constant 0 : index
    %c0_11 = arith.constant 0 : index
    %11 = vector.load %arg5[%c0_9, %c0_10, %c0_11] : memref<1x8x256xf32, #tpu.memory_space<vmem>>, vector<1x8x256xf32>
    %12 = vector.shape_cast %11 : vector<1x8x256xf32> to vector<8x256xf32>
    %cst_12 = arith.constant dense<0.000000e+00> : vector<8x8xf32>
    %13 = tpu.matmul %12, %10, %cst_12 {dimension_numbers = #tpu.dot_dimension_numbers<[1], [0], [0], [1], [0, 0, 1, 1], [], []>} : vector<8x256xf32>, vector<256x8xf32>, vector<8x8xf32> -> vector<8x8xf32>
    %c0_13 = arith.constant 0 : index
    %c0_14 = arith.constant 0 : index
    %c0_15 = arith.constant 0 : index
    %14 = vector.load %arg6[%c0_13, %c0_14, %c0_15] : memref<1x8x1xf32, #tpu.memory_space<vmem>>, vector<1x8x1xf32>
    %15 = vector.shape_cast %14 : vector<1x8x1xf32> to vector<8x1xf32>
    %16 = vector.broadcast %15 : vector<8x1xf32> to vector<8x8xf32>
    %17 = arith.addf %13, %16 : vector<8x8xf32>
    %c0_16 = arith.constant 0 : index
    %c0_17 = arith.constant 0 : index
    %c0_18 = arith.constant 0 : index
    %18 = vector.load %arg7[%c0_16, %c0_17, %c0_18] : memref<1x8x8xf32, #tpu.memory_space<vmem>>, vector<1x8x8xf32>
    %19 = vector.shape_cast %18 : vector<1x8x8xf32> to vector<8x8xf32>
    %20 = vector.shape_cast %17 : vector<8x8xf32> to vector<1x8x8xf32>
    tpu.vector_store %arg7[%c0_16, %c0_17, %c0_18], %20 {strides = array<i32>} : memref<1x8x8xf32, #tpu.memory_space<vmem>>, vector<1x8x8xf32>,
    return
  }
  func.func @transform_0(%arg0: i32, %arg1: i32) -> (i32, i32, i32) {
    %c0_i32 = arith.constant 0 : i32
    %c0_i32_0 = arith.constant 0 : i32
    return %arg0, %c0_i32, %arg1 : i32, i32, i32
  }
  func.func @transform_1(%arg0: i32, %arg1: i32) -> (i32, i32, i32) {
    %c0_i32 = arith.constant 0 : i32
    %c0_i32_0 = arith.constant 0 : i32
    %c0_i32_1 = arith.constant 0 : i32
    return %arg0, %c0_i32, %c0_i32_0 : i32, i32, i32
  }
  func.func @transform_2(%arg0: i32, %arg1: i32) -> (i32, i32, i32) {
    %c0_i32 = arith.constant 0 : i32
    %c0_i32_0 = arith.constant 0 : i32
    %c0_i32_1 = arith.constant 0 : i32
    return %arg0, %c0_i32, %c0_i32_0 : i32, i32, i32
  }
  func.func @transform_3(%arg0: i32, %arg1: i32) -> (i32, i32, i32) {
    %c0_i32 = arith.constant 0 : i32
    %c0_i32_0 = arith.constant 0 : i32
    %c0_i32_1 = arith.constant 0 : i32
    return %arg0, %c0_i32, %c0_i32_0 : i32, i32, i32
  }
  func.func @transform_4(%arg0: i32, %arg1: i32) -> (i32, i32, i32) {
    %c0_i32 = arith.constant 0 : i32
    %c0_i32_0 = arith.constant 0 : i32
    %c0_i32_1 = arith.constant 0 : i32
    return %arg0, %c0_i32, %c0_i32_0 : i32, i32, i32
  }
  func.func @transform_5(%arg0: i32, %arg1: i32) -> (i32, i32, i32) {
    %c0_i32 = arith.constant 0 : i32
    %c0_i32_0 = arith.constant 0 : i32
    return %arg0, %c0_i32, %arg1 : i32, i32, i32
  }
}

</mosaic_0001>

<llo_original>
// kernel: rho_critic_forward.1
$region0: #{rho_critic_forward.1}
  #allocation0 [shape = 'u32[]', space=smem, size = 0x4, offset = 0x4, fixed_abs, tag = 'smem constant byte address 0x4 - core index']
  #allocation1 [shape = 'u32[144,128]{1,0:T(1,128)}', space=vmem, size = 0x12000, scoped, tag = 'internal scratch']
  %s0 = inlined_call_operand.vmem [shape: f32[2,32,8], index: 0, kind: input, shape index: {}]
  %s1 = inlined_call_operand.vmem [shape: f32[2,256,32], index: 1, kind: input, shape index: {}]
  %s2 = inlined_call_operand.vmem [shape: f32[2,256,1], index: 2, kind: input, shape index: {}]
  %s3 = inlined_call_operand.vmem [shape: f32[2,8,256], index: 3, kind: input, shape index: {}]
  %s4 = inlined_call_operand.vmem [shape: f32[2,8,1], index: 4, kind: input, shape index: {}]
  %s5 = inlined_call_operand.vmem [shape: f32[2,8,8], index: 5, kind: output, shape index: {}]
  %s6 = sld [smem:[#allocation0]]
  $region53: #{rho_critic_forward.1} parent=0
    _
  %s8 = ssub.s32 1, %s6
  %s9 = scalar_select 0, %s8, %s6
  loop: start=0, step=1, limit=4
  $region2: #{rho_critic_forward.1} parent=0 // loop_pre_header
    _
  $region3: #{rho_critic_forward.1} parent=0 // loop_header
    %s11 = sphi 0, %s15
    %p12 = scmp.ge.s32.totalorder %s11, 4
    %s18 = sphi 0, %s30
    %s19 = sphi 0, %s26
    %s20 = sphi 0, %s18
    %s21 = sphi 0, %s19
    %s22 = sphi 0, %s20
    %s23 = sphi 0, %s21
    %s35 = sphi 0, %s37
    %s38 = sphi 0, %s35
    %s39 = sphi 0, %s38
    %s55 = sphi 0, %s39
    %s61 = sphi 0, %s63
    %s64 = sphi 0, %s61
    %s65 = sphi 0, %s64
    %s81 = sphi 0, %s65
    %s87 = sphi 0, %s89
    %s90 = sphi 0, %s87
    %s91 = sphi 0, %s90
    %s107 = sphi 0, %s91
    %s113 = sphi 0, %s115
    %s116 = sphi 0, %s113
    %s117 = sphi 0, %s116
    %s133 = sphi 0, %s117
    %s139 = sphi 0, %s141
    %s142 = sphi 0, %s139
    %s143 = sphi 0, %s142
    %s159 = sphi 0, %s143
    %s167 = sphi 0, %s169
    %s170 = sphi 0, %s167
    %s171 = sphi 0, %s170
    %s187 = sphi 0, %s171
  $region4: #{rho_critic_forward.1} parent=0 // loop_header_branch
    %14 = sbr.rel (%p12) target = $region8
  $region5: #{rho_critic_forward.1} parent=0 // loop_body
    %s16 = ssub.s32 %s11, 1
    %s17 = ssub.s32 %s11, 2
    %s24 = sadd.s32 1, %s19
    %p25 = scmp.ge.s32.totalorder %s24, 1
    %s26 = scalar_select %p25, 0, %s24
    %s27 = sadd.s32 1, %s18
    %s28 = scalar_select %p25, %s27, %s18
    %p29 = scmp.ge.s32.totalorder %s28, 2
    %s30 = scalar_select %p29, 0, %s28
    %s31 = ssub.s32 %s18, %s30
    %s32 = ssub.s32 %s19, %s26
    %s33 = sor.u32 %s31, %s32
    %p34 = scmp.eq.s32.totalorder %s33, 0
    %s36 = sadd.s32 %s35, 1
    %s37 = scalar_select %p34, %s35, %s36
    %p40 = pneg %p34
    %p41 = scmp.eq.s32.totalorder %s11, 1
    %p42 = por %p40, %p41
    %p43 = scmp.ne.s32.totalorder %s35, %s38
    %p44 = scmp.eq.s32.totalorder %s11, 0
    %p45 = por %p43, %p44
    %p46 = scmp.ne.s32.totalorder %s35, %s38
    %p47 = scmp.eq.s32.totalorder %s16, 1
    %p48 = por %p46, %p47
    %p49 = scmp.ne.s32.totalorder %s38, %s39
    %p50 = scmp.eq.s32.totalorder %s16, 0
    %p51 = por %p49, %p50
    %p52 = scmp.ne.s32.totalorder %s38, %s39
    %p53 = scmp.eq.s32.totalorder %s17, 1
    %p54 = por %p52, %p53
    %p56 = scmp.ne.s32.totalorder %s39, %s55
    %p57 = scmp.eq.s32.totalorder %s17, 0
    %p58 = por %p56, %p57
    %s59 = ssub.s32 %s18, %s30
    %p60 = scmp.eq.s32.totalorder %s59, 0
    %s62 = sadd.s32 %s61, 1
    %s63 = scalar_select %p60, %s61, %s62
    %p66 = pneg %p60
    %p67 = scmp.eq.s32.totalorder %s11, 1
    %p68 = por %p66, %p67
    %p69 = scmp.ne.s32.totalorder %s61, %s64
    %p70 = scmp.eq.s32.totalorder %s11, 0
    %p71 = por %p69, %p70
    %p72 = scmp.ne.s32.totalorder %s61, %s64
    %p73 = scmp.eq.s32.totalorder %s16, 1
    %p74 = por %p72, %p73
    %p75 = scmp.ne.s32.totalorder %s64, %s65
    %p76 = scmp.eq.s32.totalorder %s16, 0
    %p77 = por %p75, %p76
    %p78 = scmp.ne.s32.totalorder %s64, %s65
    %p79 = scmp.eq.s32.totalorder %s17, 1
    %p80 = por %p78, %p79
    %p82 = scmp.ne.s32.totalorder %s65, %s81
    %p83 = scmp.eq.s32.totalorder %s17, 0
    %p84 = por %p82, %p83
    %s85 = ssub.s32 %s18, %s30
    %p86 = scmp.eq.s32.totalorder %s85, 0
    %s88 = sadd.s32 %s87, 1
    %s89 = scalar_select %p86, %s87, %s88
    %p92 = pneg %p86
    %p93 = scmp.eq.s32.totalorder %s11, 1
    %p94 = por %p92, %p93
    %p95 = scmp.ne.s32.totalorder %s87, %s90
    %p96 = scmp.eq.s32.totalorder %s11, 0
    %p97 = por %p95, %p96
    %p98 = scmp.ne.s32.totalorder %s87, %s90
    %p99 = scmp.eq.s32.totalorder %s16, 1
    %p100 = por %p98, %p99
    %p101 = scmp.ne.s32.totalorder %s90, %s91
    %p102 = scmp.eq.s32.totalorder %s16, 0
    %p103 = por %p101, %p102
    %p104 = scmp.ne.s32.totalorder %s90, %s91
    %p105 = scmp.eq.s32.totalorder %s17, 1
    %p106 = por %p104, %p105
    %p108 = scmp.ne.s32.totalorder %s91, %s107
    %p109 = scmp.eq.s32.totalorder %s17, 0
    %p110 = por %p108, %p109
    %s111 = ssub.s32 %s18, %s30
    %p112 = scmp.eq.s32.totalorder %s111, 0
    %s114 = sadd.s32 %s113, 1
    %s115 = scalar_select %p112, %s113, %s114
    %p118 = pneg %p112
    %p119 = scmp.eq.s32.totalorder %s11, 1
    %p120 = por %p118, %p119
    %p121 = scmp.ne.s32.totalorder %s113, %s116
    %p122 = scmp.eq.s32.totalorder %s11, 0
    %p123 = por %p121, %p122
    %p124 = scmp.ne.s32.totalorder %s113, %s116
    %p125 = scmp.eq.s32.totalorder %s16, 1
    %p126 = por %p124, %p125
    %p127 = scmp.ne.s32.totalorder %s116, %s117
    %p128 = scmp.eq.s32.totalorder %s16, 0
    %p129 = por %p127, %p128
    %p130 = scmp.ne.s32.totalorder %s116, %s117
    %p131 = scmp.eq.s32.totalorder %s17, 1
    %p132 = por %p130, %p131
    %p134 = scmp.ne.s32.totalorder %s117, %s133
    %p135 = scmp.eq.s32.totalorder %s17, 0
    %p136 = por %p134, %p135
    %s137 = ssub.s32 %s18, %s30
    %p138 = scmp.eq.s32.totalorder %s137, 0
    %s140 = sadd.s32 %s139, 1
    %s141 = scalar_select %p138, %s139, %s140
    %p144 = pneg %p138
    %p145 = scmp.eq.s32.totalorder %s11, 1
    %p146 = por %p144, %p145
    %p147 = scmp.ne.s32.totalorder %s139, %s142
    %p148 = scmp.eq.s32.totalorder %s11, 0
    %p149 = por %p147, %p148
    %p150 = scmp.ne.s32.totalorder %s139, %s142
    %p151 = scmp.eq.s32.totalorder %s16, 1
    %p152 = por %p150, %p151
    %p153 = scmp.ne.s32.totalorder %s142, %s143
    %p154 = scmp.eq.s32.totalorder %s16, 0
    %p155 = por %p153, %p154
    %p156 = scmp.ne.s32.totalorder %s142, %s143
    %p157 = scmp.eq.s32.totalorder %s17, 1
    %p158 = por %p156, %p157
    %p160 = scmp.ne.s32.totalorder %s143, %s159
    %p161 = scmp.eq.s32.totalorder %s17, 0
    %p162 = por %p160, %p161
    %s163 = ssub.s32 %s18, %s30
    %s164 = ssub.s32 %s19, %s26
    %s165 = sor.u32 %s163, %s164
    %p166 = scmp.eq.s32.totalorder %s165, 0
    %s168 = sadd.s32 %s167, 1
    %s169 = scalar_select %p166, %s167, %s168
    %p172 = pneg %p166
    %p173 = scmp.eq.s32.totalorder %s11, 1
    %p174 = por %p172, %p173
    %p175 = scmp.ne.s32.totalorder %s167, %s170
    %p176 = scmp.eq.s32.totalorder %s11, 0
    %p177 = por %p175, %p176
    %p178 = scmp.ne.s32.totalorder %s167, %s170
    %p179 = scmp.eq.s32.totalorder %s16, 1
    %p180 = por %p178, %p179
    %p181 = scmp.ne.s32.totalorder %s170, %s171
    %p182 = scmp.eq.s32.totalorder %s16, 0
    %p183 = por %p181, %p182
    %p184 = scmp.ne.s32.totalorder %s170, %s171
    %p185 = scmp.eq.s32.totalorder %s17, 1
    %p186 = por %p184, %p185
    %p188 = scmp.ne.s32.totalorder %s171, %s187
    %p189 = scmp.eq.s32.totalorder %s17, 0
    %p190 = por %p188, %p189
    %p191 = scmp.le.s32.totalorder 1, %s11
    %p192 = scmp.lt.s32.totalorder %s11, 3
    %p193 = pnand %p191, %p192
    %p194 = pneg %p193
    // Predicated region
    $region9: #{rho_critic_forward.1} parent=5 // pred_check
      _
    $region10: #{rho_critic_forward.1} parent=5 // pred_check_branch
      %196 = sbr.rel (%p193) target = $region12
    $region11: #{rho_critic_forward.1} parent=5 // pred_region
      %s197 = ssub.s32 %s11, 1
    $region12: #{rho_critic_forward.1} parent=5 // pred_fallthru
      _
    %p198 = scmp.lt.s32.totalorder %s11, 2
    // Predicated region
    $region13: #{rho_critic_forward.1} parent=5 // pred_check
      %p199 = pneg %p198
    $region14: #{rho_critic_forward.1} parent=5 // pred_check_branch
      %201 = sbr.rel (%p199) target = $region16
    $region15: #{rho_critic_forward.1} parent=5 // pred_region
      // Predicated region
      $region17: #{rho_critic_forward.1} parent=15 // pred_check
        %p202 = pneg %p45
      $region18: #{rho_critic_forward.1} parent=15 // pred_check_branch
        %204 = sbr.rel (%p202) target = $region20
      $region19: #{rho_critic_forward.1} parent=15 // pred_region
        %p205 = scmp.lt.s32.totalorder %s18, 1
        %s206 = scalar_select %p205, %s18, 1
        %p207 = scmp.lt.s32.totalorder %s19, 0
        %s208 = scalar_select %p207, %s19, 0
        %s209 = smul.addr %s206, 4
        %s210 = sadd.s32 %s208, %s209
        %s211 = smul.addr %s210, 8
        %s212 = scalar_lea.vmem %s0, %s211
      $region20: #{rho_critic_forward.1} parent=15 // pred_fallthru
        _
      // Predicated region
      $region21: #{rho_critic_forward.1} parent=15 // pred_check
        %p213 = pneg %p71
      $region22: #{rho_critic_forward.1} parent=15 // pred_check_branch
        %215 = sbr.rel (%p213) target = $region24
      $region23: #{rho_critic_forward.1} parent=15 // pred_region
        %p216 = scmp.lt.s32.totalorder %s18, 1
        %s217 = scalar_select %p216, %s18, 1
        %s218 = smul.addr %s217, 32
        %s219 = smul.addr %s218, 8
        %s220 = scalar_lea.vmem %s1, %s219
      $region24: #{rho_critic_forward.1} parent=15 // pred_fallthru
        _
      // Predicated region
      $region25: #{rho_critic_forward.1} parent=15 // pred_check
        %p221 = pneg %p97
      $region26: #{rho_critic_forward.1} parent=15 // pred_check_branch
        %223 = sbr.rel (%p221) target = $region28
      $region27: #{rho_critic_forward.1} parent=15 // pred_region
        %p224 = scmp.lt.s32.totalorder %s18, 1
        %s225 = scalar_select %p224, %s18, 1
        %s226 = smul.addr %s225, 32
        %s227 = smul.addr %s226, 8
        %s228 = scalar_lea.vmem %s2, %s227
      $region28: #{rho_critic_forward.1} parent=15 // pred_fallthru
        _
      // Predicated region
      $region29: #{rho_critic_forward.1} parent=15 // pred_check
        %p229 = pneg %p123
      $region30: #{rho_critic_forward.1} parent=15 // pred_check_branch
        %231 = sbr.rel (%p229) target = $region32
      $region31: #{rho_critic_forward.1} parent=15 // pred_region
        %p232 = scmp.lt.s32.totalorder %s18, 1
        %s233 = scalar_select %p232, %s18, 1
        %s234 = smul.addr %s233, 2
        %s235 = smul.addr %s234, 8
        %s236 = scalar_lea.vmem %s3, %s235
      $region32: #{rho_critic_forward.1} parent=15 // pred_fallthru
        _
      // Predicated region
      $region33: #{rho_critic_forward.1} parent=15 // pred_check
        %p237 = pneg %p149
      $region34: #{rho_critic_forward.1} parent=15 // pred_check_branch
        %239 = sbr.rel (%p237) target = $region36
      $region35: #{rho_critic_forward.1} parent=15 // pred_region
        %p240 = scmp.lt.s32.totalorder %s18, 1
        %s241 = scalar_select %p240, %s18, 1
        %s242 = smul.addr %s241, 8
        %s243 = scalar_lea.vmem %s4, %s242
      $region36: #{rho_critic_forward.1} parent=15 // pred_fallthru
        _
    $region16: #{rho_critic_forward.1} parent=5 // pred_fallthru
      _
    %p244 = scmp.le.s32.totalorder 1, %s11
    %p245 = scmp.lt.s32.totalorder %s11, 3
    %p246 = pnand %p244, %p245
    %p247 = pneg %p246
    // Predicated region
    $region37: #{rho_critic_forward.1} parent=5 // pred_check
      _
    $region38: #{rho_critic_forward.1} parent=5 // pred_check_branch
      %249 = sbr.rel (%p246) target = $region40
    $region39: #{rho_critic_forward.1} parent=5 // pred_region
      %s250 = ssub.s32 %s11, 1
      %p251 = scmp.lt.s32.totalorder %s20, 1
      %s252 = scalar_select %p251, %s20, 1
      %p253 = scmp.lt.s32.totalorder %s21, 0
      %s254 = scalar_select %p253, %s21, 0
      %s255 = smul.addr %s252, 4
      %s256 = sadd.s32 %s254, %s255
      %s257 = smul.addr %s256, 8
      %s258 = scalar_lea.vmem %s0, %s257
      %p259 = pneg %p51
      %p260 = pneg %p48
      %p261 = scmp.lt.s32.totalorder %s20, 1
      %s262 = scalar_select %p261, %s20, 1
      %s263 = smul.addr %s262, 32
      %s264 = smul.addr %s263, 8
      %s265 = scalar_lea.vmem %s1, %s264
      %p266 = pneg %p77
      %p267 = pneg %p74
      %p268 = scmp.lt.s32.totalorder %s20, 1
      %s269 = scalar_select %p268, %s20, 1
      %s270 = smul.addr %s269, 32
      %s271 = smul.addr %s270, 8
      %s272 = scalar_lea.vmem %s2, %s271
      %p273 = pneg %p103
      %p274 = pneg %p100
      %p275 = scmp.lt.s32.totalorder %s20, 1
      %s276 = scalar_select %p275, %s20, 1
      %s277 = smul.addr %s276, 2
      %s278 = smul.addr %s277, 8
      %s279 = scalar_lea.vmem %s3, %s278
      %p280 = pneg %p129
      %p281 = pneg %p126
      %p282 = scmp.lt.s32.totalorder %s20, 1
      %s283 = scalar_select %p282, %s20, 1
      %s284 = smul.addr %s283, 8
      %s285 = scalar_lea.vmem %s4, %s284
      %p286 = pneg %p155
      %p287 = pneg %p152
      %p288 = pneg %p183
      %p289 = pneg %p180
      %p290 = scmp.lt.s32.totalorder %s20, 1
      %s291 = scalar_select %p290, %s20, 1
      %p292 = scmp.lt.s32.totalorder %s21, 0
      %s293 = scalar_select %p292, %s21, 0
      %s294 = sadd.s32 %s293, %s291
      %s295 = smul.addr %s294, 8
      %s296 = scalar_lea.vmem %s5, %s295
      %p297 = scmp.lt.s32.totalorder %s20, 1
      %s298 = scalar_select %p297, %s20, 1
      %p299 = scmp.lt.s32.totalorder %s21, 0
      %s300 = scalar_select %p299, %s21, 0
      %s301 = smul.addr %s298, 4
      %s302 = sadd.s32 %s300, %s301
      %s303 = smul.addr %s302, 8
      %s304 = scalar_lea.vmem %s0, %s303
      %p305 = scmp.lt.s32.totalorder %s20, 1
      %s306 = scalar_select %p305, %s20, 1
      %s307 = smul.addr %s306, 32
      %s308 = smul.addr %s307, 8
      %s309 = scalar_lea.vmem %s1, %s308
      %p310 = scmp.lt.s32.totalorder %s20, 1
      %s311 = scalar_select %p310, %s20, 1
      %s312 = smul.addr %s311, 32
      %s313 = smul.addr %s312, 8
      %s314 = scalar_lea.vmem %s2, %s313
      %p315 = scmp.lt.s32.totalorder %s20, 1
      %s316 = scalar_select %p315, %s20, 1
      %s317 = smul.addr %s316, 2
      %s318 = smul.addr %s317, 8
      %s319 = scalar_lea.vmem %s3, %s318
      %p320 = scmp.lt.s32.totalorder %s20, 1
      %s321 = scalar_select %p320, %s20, 1
      %s322 = smul.addr %s321, 8
      %s323 = scalar_lea.vmem %s4, %s322
      %p324 = scmp.lt.s32.totalorder %s20, 1
      %s325 = scalar_select %p324, %s20, 1
      %p326 = scmp.lt.s32.totalorder %s21, 0
      %s327 = scalar_select %p326, %s21, 0
      %s328 = sadd.s32 %s327, %s325
      %s329 = smul.addr %s328, 8
      %s330 = scalar_lea.vmem %s5, %s329
      %v331 = vld [vmem:[%s309] sm:$0xff]
      %v332 = vld [vmem:[%s309 + $0x8] sm:$0xff]
      %v333 = vld [vmem:[%s309 + $0x10] sm:$0xff]
      %v334 = vld [vmem:[%s309 + $0x18] sm:$0xff]
      %v335 = vld [vmem:[%s309 + $0x20] sm:$0xff]
      %v336 = vld [vmem:[%s309 + $0x28] sm:$0xff]
      %v337 = vld [vmem:[%s309 + $0x30] sm:$0xff]
      %v338 = vld [vmem:[%s309 + $0x38] sm:$0xff]
      %v339 = vld [vmem:[%s309 + $0x40] sm:$0xff]
      %v340 = vld [vmem:[%s309 + $0x48] sm:$0xff]
      %v341 = vld [vmem:[%s309 + $0x50] sm:$0xff]
      %v342 = vld [vmem:[%s309 + $0x58] sm:$0xff]
      %v343 = vld [vmem:[%s309 + $0x60] sm:$0xff]
      %v344 = vld [vmem:[%s309 + $0x68] sm:$0xff]
      %v345 = vld [vmem:[%s309 + $0x70] sm:$0xff]
      %v346 = vld [vmem:[%s309 + $0x78] sm:$0xff]
      %v347 = vld [vmem:[%s309 + $0x80] sm:$0xff]
      %v348 = vld [vmem:[%s309 + $0x88] sm:$0xff]
      %v349 = vld [vmem:[%s309 + $0x90] sm:$0xff]
      %v350 = vld [vmem:[%s309 + $0x98] sm:$0xff]
      %v351 = vld [vmem:[%s309 + $0xa0] sm:$0xff]
      %v352 = vld [vmem:[%s309 + $0xa8] sm:$0xff]
      %v353 = vld [vmem:[%s309 + $0xb0] sm:$0xff]
      %v354 = vld [vmem:[%s309 + $0xb8] sm:$0xff]
      %v355 = vld [vmem:[%s309 + $0xc0] sm:$0xff]
      %v356 = vld [vmem:[%s309 + $0xc8] sm:$0xff]
      %v357 = vld [vmem:[%s309 + $0xd0] sm:$0xff]
      %v358 = vld [vmem:[%s309 + $0xd8] sm:$0xff]
      %v359 = vld [vmem:[%s309 + $0xe0] sm:$0xff]
      %v360 = vld [vmem:[%s309 + $0xe8] sm:$0xff]
      %v361 = vld [vmem:[%s309 + $0xf0] sm:$0xff]
      %v362 = vld [vmem:[%s309 + $0xf8] sm:$0xff]
      %v363 = vld [vmem:[%s304] sm:$0xff]
      %v364 = vld [vmem:[%s304 + $0x8] sm:$0xff]
      %v365 = vld [vmem:[%s304 + $0x10] sm:$0xff]
      %v366 = vld [vmem:[%s304 + $0x18] sm:$0xff]
      %v367 = vld [vmem:[%s314] sm:$0xff]
      %v368 = vld [vmem:[%s314 + $0x8] sm:$0xff]
      %v369 = vld [vmem:[%s314 + $0x10] sm:$0xff]
      %v370 = vld [vmem:[%s314 + $0x18] sm:$0xff]
      %v371 = vld [vmem:[%s314 + $0x20] sm:$0xff]
      %v372 = vld [vmem:[%s314 + $0x28] sm:$0xff]
      %v373 = vld [vmem:[%s314 + $0x30] sm:$0xff]
      %v374 = vld [vmem:[%s314 + $0x38] sm:$0xff]
      %v375 = vld [vmem:[%s314 + $0x40] sm:$0xff]
      %v376 = vld [vmem:[%s314 + $0x48] sm:$0xff]
      %v377 = vld [vmem:[%s314 + $0x50] sm:$0xff]
      %v378 = vld [vmem:[%s314 + $0x58] sm:$0xff]
      %v379 = vld [vmem:[%s314 + $0x60] sm:$0xff]
      %v380 = vld [vmem:[%s314 + $0x68] sm:$0xff]
      %v381 = vld [vmem:[%s314 + $0x70] sm:$0xff]
      %v382 = vld [vmem:[%s314 + $0x78] sm:$0xff]
      %v383 = vld [vmem:[%s314 + $0x80] sm:$0xff]
      %v384 = vld [vmem:[%s314 + $0x88] sm:$0xff]
      %v385 = vld [vmem:[%s314 + $0x90] sm:$0xff]
      %v386 = vld [vmem:[%s314 + $0x98] sm:$0xff]
      %v387 = vld [vmem:[%s314 + $0xa0] sm:$0xff]
      %v388 = vld [vmem:[%s314 + $0xa8] sm:$0xff]
      %v389 = vld [vmem:[%s314 + $0xb0] sm:$0xff]
      %v390 = vld [vmem:[%s314 + $0xb8] sm:$0xff]
      %v391 = vld [vmem:[%s314 + $0xc0] sm:$0xff]
      %v392 = vld [vmem:[%s314 + $0xc8] sm:$0xff]
      %v393 = vld [vmem:[%s314 + $0xd0] sm:$0xff]
      %v394 = vld [vmem:[%s314 + $0xd8] sm:$0xff]
      %v395 = vld [vmem:[%s314 + $0xe0] sm:$0xff]
      %v396 = vld [vmem:[%s314 + $0xe8] sm:$0xff]
      %v397 = vld [vmem:[%s314 + $0xf0] sm:$0xff]
      %v398 = vld [vmem:[%s314 + $0xf8] sm:$0xff]
      %400 = vset.pattern.permute.xlu0 0
      %401 = vperm.xlu0 %400, %v367
      %v402 = vpop.permute.xlu0 %401
      %405 = vset.pattern.permute.xlu0 0
      %406 = vperm.xlu0 %405, %v368
      %v407 = vpop.permute.xlu0 %406
      %410 = vset.pattern.permute.xlu0 0
      %411 = vperm.xlu0 %410, %v369
      %v412 = vpop.permute.xlu0 %411
      %415 = vset.pattern.permute.xlu0 0
      %416 = vperm.xlu0 %415, %v370
      %v417 = vpop.permute.xlu0 %416
      %420 = vset.pattern.permute.xlu0 0
      %421 = vperm.xlu0 %420, %v371
      %v422 = vpop.permute.xlu0 %421
      %425 = vset.pattern.permute.xlu0 0
      %426 = vperm.xlu0 %425, %v372
      %v427 = vpop.permute.xlu0 %426
      %430 = vset.pattern.permute.xlu0 0
      %431 = vperm.xlu0 %430, %v373
      %v432 = vpop.permute.xlu0 %431
      %435 = vset.pattern.permute.xlu0 0
      %436 = vperm.xlu0 %435, %v374
      %v437 = vpop.permute.xlu0 %436
      %440 = vset.pattern.permute.xlu0 0
      %441 = vperm.xlu0 %440, %v375
      %v442 = vpop.permute.xlu0 %441
      %445 = vset.pattern.permute.xlu0 0
      %446 = vperm.xlu0 %445, %v376
      %v447 = vpop.permute.xlu0 %446
      %450 = vset.pattern.permute.xlu0 0
      %451 = vperm.xlu0 %450, %v377
      %v452 = vpop.permute.xlu0 %451
      %455 = vset.pattern.permute.xlu0 0
      %456 = vperm.xlu0 %455, %v378
      %v457 = vpop.permute.xlu0 %456
      %460 = vset.pattern.permute.xlu0 0
      %461 = vperm.xlu0 %460, %v379
      %v462 = vpop.permute.xlu0 %461
      %465 = vset.pattern.permute.xlu0 0
      %466 = vperm.xlu0 %465, %v380
      %v467 = vpop.permute.xlu0 %466
      %470 = vset.pattern.permute.xlu0 0
      %471 = vperm.xlu0 %470, %v381
      %v472 = vpop.permute.xlu0 %471
      %475 = vset.pattern.permute.xlu0 0
      %476 = vperm.xlu0 %475, %v382
      %v477 = vpop.permute.xlu0 %476
      %480 = vset.pattern.permute.xlu0 0
      %481 = vperm.xlu0 %480, %v383
      %v482 = vpop.permute.xlu0 %481
      %485 = vset.pattern.permute.xlu0 0
      %486 = vperm.xlu0 %485, %v384
      %v487 = vpop.permute.xlu0 %486
      %490 = vset.pattern.permute.xlu0 0
      %491 = vperm.xlu0 %490, %v385
      %v492 = vpop.permute.xlu0 %491
      %495 = vset.pattern.permute.xlu0 0
      %496 = vperm.xlu0 %495, %v386
      %v497 = vpop.permute.xlu0 %496
      %500 = vset.pattern.permute.xlu0 0
      %501 = vperm.xlu0 %500, %v387
      %v502 = vpop.permute.xlu0 %501
      %505 = vset.pattern.permute.xlu0 0
      %506 = vperm.xlu0 %505, %v388
      %v507 = vpop.permute.xlu0 %506
      %510 = vset.pattern.permute.xlu0 0
      %511 = vperm.xlu0 %510, %v389
      %v512 = vpop.permute.xlu0 %511
      %515 = vset.pattern.permute.xlu0 0
      %516 = vperm.xlu0 %515, %v390
      %v517 = vpop.permute.xlu0 %516
      %520 = vset.pattern.permute.xlu0 0
      %521 = vperm.xlu0 %520, %v391
      %v522 = vpop.permute.xlu0 %521
      %525 = vset.pattern.permute.xlu0 0
      %526 = vperm.xlu0 %525, %v392
      %v527 = vpop.permute.xlu0 %526
      %530 = vset.pattern.permute.xlu0 0
      %531 = vperm.xlu0 %530, %v393
      %v532 = vpop.permute.xlu0 %531
      %535 = vset.pattern.permute.xlu0 0
      %536 = vperm.xlu0 %535, %v394
      %v537 = vpop.permute.xlu0 %536
      %540 = vset.pattern.permute.xlu0 0
      %541 = vperm.xlu0 %540, %v395
      %v542 = vpop.permute.xlu0 %541
      %545 = vset.pattern.permute.xlu0 0
      %546 = vperm.xlu0 %545, %v396
      %v547 = vpop.permute.xlu0 %546
      %550 = vset.pattern.permute.xlu0 0
      %551 = vperm.xlu0 %550, %v397
      %v552 = vpop.permute.xlu0 %551
      %555 = vset.pattern.permute.xlu0 0
      %556 = vperm.xlu0 %555, %v398
      %v557 = vpop.permute.xlu0 %556
      %vm559 = vcmask 261120
      %v561 = vsel %vm559, %v331, 0
      %v564 = vsel %vm559, %v332, 0
      %v567 = vsel %vm559, %v333, 0
      %v570 = vsel %vm559, %v334, 0
      %v573 = vsel %vm559, %v335, 0
      %v576 = vsel %vm559, %v336, 0
      %v579 = vsel %vm559, %v337, 0
      %v582 = vsel %vm559, %v338, 0
      %v585 = vsel %vm559, %v339, 0
      %v588 = vsel %vm559, %v340, 0
      %v591 = vsel %vm559, %v341, 0
      %v594 = vsel %vm559, %v342, 0
      %v597 = vsel %vm559, %v343, 0
      %v600 = vsel %vm559, %v344, 0
      %v603 = vsel %vm559, %v345, 0
      %v606 = vsel %vm559, %v346, 0
      %v609 = vsel %vm559, %v347, 0
      %v612 = vsel %vm559, %v348, 0
      %v615 = vsel %vm559, %v349, 0
      %v618 = vsel %vm559, %v350, 0
      %v621 = vsel %vm559, %v351, 0
      %v624 = vsel %vm559, %v352, 0
      %v627 = vsel %vm559, %v353, 0
      %v630 = vsel %vm559, %v354, 0
      %v633 = vsel %vm559, %v355, 0
      %v636 = vsel %vm559, %v356, 0
      %v639 = vsel %vm559, %v357, 0
      %v642 = vsel %vm559, %v358, 0
      %v645 = vsel %vm559, %v359, 0
      %v648 = vsel %vm559, %v360, 0
      %v651 = vsel %vm559, %v361, 0
      %v654 = vsel %vm559, %v362, 0
      %656 = vmatprep.subr.mxu0 0.0
      %657 = vmatpush1.msra.mxu0 %v363
      %658 = vmatprep.subr.mxu0 0.0
      %659 = vmatpush1.msra.mxu0 %v364
      %660 = vmatprep.subr.mxu0 0.0
      %661 = vmatpush1.msra.mxu0 %v365
      %662 = vmatprep.subr.mxu0 0.0
      %663 = vmatpush1.msra.mxu0 %v366
      %664 = vmatprep.subr.mxu0 0.0
      %665 = vmatpush1.msra.mxu0 0.0
      %666 = vmatprep.subr.mxu0 0.0
      %667 = vmatpush1.msra.mxu0 0.0
      %668 = vmatprep.subr.mxu0 0.0
      %669 = vmatpush1.msra.mxu0 0.0
      %670 = vmatprep.subr.mxu0 0.0
      %671 = vmatpush1.msra.mxu0 0.0
      %672 = vmatprep.subr.mxu0 0.0
      %673 = vmatpush1.msra.mxu0 0.0
      %674 = vmatprep.subr.mxu0 0.0
      %675 = vmatpush1.msra.mxu0 0.0
      %676 = vmatprep.subr.mxu0 0.0
      %677 = vmatpush1.msra.mxu0 0.0
      %678 = vmatprep.subr.mxu0 0.0
      %679 = vmatpush1.msra.mxu0 0.0
      %680 = vmatprep.subr.mxu0 0.0
      %681 = vmatpush1.msra.mxu0 0.0
      %682 = vmatprep.subr.mxu0 0.0
      %683 = vmatpush1.msra.mxu0 0.0
      %684 = vmatprep.subr.mxu0 0.0
      %685 = vmatpush1.msra.mxu0 0.0
      %686 = vmatprep.subr.mxu0 0.0
      %687 = vmatpush1.msra.mxu0 0.0
      %688 = vmatprep.subr.mxu0 0.0
      %689 = vmatpush1.msra.mxu0 0.0
      %690 = vmatprep.subr.mxu0 0.0
      %691 = vmatpush1.msra.mxu0 0.0
      %692 = vmatprep.subr.mxu0 0.0
      %693 = vmatpush1.msra.mxu0 0.0
      %694 = vmatprep.subr.mxu0 0.0
      %695 = vmatpush1.msra.mxu0 0.0
      %696 = vmatprep.subr.mxu0 0.0
      %697 = vmatpush1.msra.mxu0 0.0
      %698 = vmatprep.subr.mxu0 0.0
      %699 = vmatpush1.msra.mxu0 0.0
      %700 = vmatprep.subr.mxu0 0.0
      %701 = vmatpush1.msra.mxu0 0.0
      %702 = vmatprep.subr.mxu0 0.0
      %703 = vmatpush1.msra.mxu0 0.0
      %704 = vmatprep.subr.mxu0 0.0
      %705 = vmatpush1.msra.mxu0 0.0
      %706 = vmatprep.subr.mxu0 0.0
      %707 = vmatpush1.msra.mxu0 0.0
      %708 = vmatprep.subr.mxu0 0.0
      %709 = vmatpush1.msra.mxu0 0.0
      %710 = vmatprep.subr.mxu0 0.0
      %711 = vmatpush1.msra.mxu0 0.0
      %712 = vmatprep.subr.mxu0 0.0
      %713 = vmatpush1.msra.mxu0 0.0
      %714 = vmatprep.subr.mxu0 0.0
      %715 = vmatpush1.msra.mxu0 0.0
      %716 = vmatprep.subr.mxu0 0.0
      %717 = vmatpush1.msra.mxu0 0.0
      %718 = vmatprep.subr.mxu0 0.0
      %719 = vmatpush1.msra.mxu0 0.0
      %720 = vmatprep.mubr.f32.mxu0 0.0
      %721 = vmatmul.mubr.f32.gmra.mrb[0].mxu0 %v561
      %v722 = vpop.f32.mrb[0].mxu0
      %v723 = vadd.f32 %v402, %v722
      %v724 = vpop.f32.mrb[0].mxu0
      %725 = vmatprep.mubr.f32.mxu0 0.0
      %726 = vmatmul.mubr.f32.gmra.mrb[0].mxu0 %v564
      %v727 = vpop.f32.mrb[0].mxu0
      %v728 = vadd.f32 %v407, %v727
      %v729 = vpop.f32.mrb[0].mxu0
      %730 = vmatprep.mubr.f32.mxu0 0.0
      %731 = vmatmul.mubr.f32.gmra.mrb[0].mxu0 %v567
      %v732 = vpop.f32.mrb[0].mxu0
      %v733 = vadd.f32 %v412, %v732
      %v734 = vpop.f32.mrb[0].mxu0
      %735 = vmatprep.mubr.f32.mxu0 0.0
      %736 = vmatmul.mubr.f32.gmra.mrb[0].mxu0 %v570
      %v737 = vpop.f32.mrb[0].mxu0
      %v738 = vadd.f32 %v417, %v737
      %v739 = vpop.f32.mrb[0].mxu0
      %740 = vmatprep.mubr.f32.mxu0 0.0
      %741 = vmatmul.mubr.f32.gmra.mrb[0].mxu0 %v573
      %v742 = vpop.f32.mrb[0].mxu0
      %v743 = vadd.f32 %v422, %v742
      %v744 = vpop.f32.mrb[0].mxu0
      %745 = vmatprep.mubr.f32.mxu0 0.0
      %746 = vmatmul.mubr.f32.gmra.mrb[0].mxu0 %v576
      %v747 = vpop.f32.mrb[0].mxu0
      %v748 = vadd.f32 %v427, %v747
      %v749 = vpop.f32.mrb[0].mxu0
      %750 = vmatprep.mubr.f32.mxu0 0.0
      %751 = vmatmul.mubr.f32.gmra.mrb[0].mxu0 %v579
      %v752 = vpop.f32.mrb[0].mxu0
      %v753 = vadd.f32 %v432, %v752
      %v754 = vpop.f32.mrb[0].mxu0
      %755 = vmatprep.mubr.f32.mxu0 0.0
      %756 = vmatmul.mubr.f32.gmra.mrb[0].mxu0 %v582
      %v757 = vpop.f32.mrb[0].mxu0
      %v758 = vadd.f32 %v437, %v757
      %v759 = vpop.f32.mrb[0].mxu0
      %760 = vmatprep.mubr.f32.mxu0 0.0
      %761 = vmatmul.mubr.f32.gmra.mrb[0].mxu0 %v585
      %v762 = vpop.f32.mrb[0].mxu0
      %v763 = vadd.f32 %v442, %v762
      %v764 = vpop.f32.mrb[0].mxu0
      %765 = vmatprep.mubr.f32.mxu0 0.0
      %766 = vmatmul.mubr.f32.gmra.mrb[0].mxu0 %v588
      %v767 = vpop.f32.mrb[0].mxu0
      %v768 = vadd.f32 %v447, %v767
      %v769 = vpop.f32.mrb[0].mxu0
      %770 = vmatprep.mubr.f32.mxu0 0.0
      %771 = vmatmul.mubr.f32.gmra.mrb[0].mxu0 %v591
      %v772 = vpop.f32.mrb[0].mxu0
      %v773 = vadd.f32 %v452, %v772
      %v774 = vpop.f32.mrb[0].mxu0
      %775 = vmatprep.mubr.f32.mxu0 0.0
      %776 = vmatmul.mubr.f32.gmra.mrb[0].mxu0 %v594
      %v777 = vpop.f32.mrb[0].mxu0
      %v778 = vadd.f32 %v457, %v777
      %v779 = vpop.f32.mrb[0].mxu0
      %780 = vmatprep.mubr.f32.mxu0 0.0
      %781 = vmatmul.mubr.f32.gmra.mrb[0].mxu0 %v597
      %v782 = vpop.f32.mrb[0].mxu0
      %v783 = vadd.f32 %v462, %v782
      %v784 = vpop.f32.mrb[0].mxu0
      %785 = vmatprep.mubr.f32.mxu0 0.0
      %786 = vmatmul.mubr.f32.gmra.mrb[0].mxu0 %v600
      %v787 = vpop.f32.mrb[0].mxu0
      %v788 = vadd.f32 %v467, %v787
      %v789 = vpop.f32.mrb[0].mxu0
      %790 = vmatprep.mubr.f32.mxu0 0.0
      %791 = vmatmul.mubr.f32.gmra.mrb[0].mxu0 %v603
      %v792 = vpop.f32.mrb[0].mxu0
      %v793 = vadd.f32 %v472, %v792
      %v794 = vpop.f32.mrb[0].mxu0
      %795 = vmatprep.mubr.f32.mxu0 0.0
      %796 = vmatmul.mubr.f32.gmra.mrb[0].mxu0 %v606
      %v797 = vpop.f32.mrb[0].mxu0
      %v798 = vadd.f32 %v477, %v797
      %v799 = vpop.f32.mrb[0].mxu0
      %800 = vmatprep.mubr.f32.mxu0 0.0
      %801 = vmatmul.mubr.f32.gmra.mrb[0].mxu0 %v609
      %v802 = vpop.f32.mrb[0].mxu0
      %v803 = vadd.f32 %v482, %v802
      %v804 = vpop.f32.mrb[0].mxu0
      %805 = vmatprep.mubr.f32.mxu0 0.0
      %806 = vmatmul.mubr.f32.gmra.mrb[0].mxu0 %v612
      %v807 = vpop.f32.mrb[0].mxu0
      %v808 = vadd.f32 %v487, %v807
      %v809 = vpop.f32.mrb[0].mxu0
      %810 = vmatprep.mubr.f32.mxu0 0.0
      %811 = vmatmul.mubr.f32.gmra.mrb[0].mxu0 %v615
      %v812 = vpop.f32.mrb[0].mxu0
      %v813 = vadd.f32 %v492, %v812
      %v814 = vpop.f32.mrb[0].mxu0
      %815 = vmatprep.mubr.f32.mxu0 0.0
      %816 = vmatmul.mubr.f32.gmra.mrb[0].mxu0 %v618
      %v817 = vpop.f32.mrb[0].mxu0
      %v818 = vadd.f32 %v497, %v817
      %v819 = vpop.f32.mrb[0].mxu0
      %820 = vmatprep.mubr.f32.mxu0 0.0
      %821 = vmatmul.mubr.f32.gmra.mrb[0].mxu0 %v621
      %v822 = vpop.f32.mrb[0].mxu0
      %v823 = vadd.f32 %v502, %v822
      %v824 = vpop.f32.mrb[0].mxu0
      %825 = vmatprep.mubr.f32.mxu0 0.0
      %826 = vmatmul.mubr.f32.gmra.mrb[0].mxu0 %v624
      %v827 = vpop.f32.mrb[0].mxu0
      %v828 = vadd.f32 %v507, %v827
      %v829 = vpop.f32.mrb[0].mxu0
      %830 = vmatprep.mubr.f32.mxu0 0.0
      %831 = vmatmul.mubr.f32.gmra.mrb[0].mxu0 %v627
      %v832 = vpop.f32.mrb[0].mxu0
      %v833 = vadd.f32 %v512, %v832
      %v834 = vpop.f32.mrb[0].mxu0
      %835 = vmatprep.mubr.f32.mxu0 0.0
      %836 = vmatmul.mubr.f32.gmra.mrb[0].mxu0 %v630
      %v837 = vpop.f32.mrb[0].mxu0
      %v838 = vadd.f32 %v517, %v837
      %v839 = vpop.f32.mrb[0].mxu0
      %840 = vmatprep.mubr.f32.mxu0 0.0
      %841 = vmatmul.mubr.f32.gmra.mrb[0].mxu0 %v633
      %v842 = vpop.f32.mrb[0].mxu0
      %v843 = vadd.f32 %v522, %v842
      %v844 = vpop.f32.mrb[0].mxu0
      %845 = vmatprep.mubr.f32.mxu0 0.0
      %846 = vmatmul.mubr.f32.gmra.mrb[0].mxu0 %v636
      %v847 = vpop.f32.mrb[0].mxu0
      %v848 = vadd.f32 %v527, %v847
      %v849 = vpop.f32.mrb[0].mxu0
      %850 = vmatprep.mubr.f32.mxu0 0.0
      %851 = vmatmul.mubr.f32.gmra.mrb[0].mxu0 %v639
      %v852 = vpop.f32.mrb[0].mxu0
      %v853 = vadd.f32 %v532, %v852
      %v854 = vpop.f32.mrb[0].mxu0
      %855 = vmatprep.mubr.f32.mxu0 0.0
      %856 = vmatmul.mubr.f32.gmra.mrb[0].mxu0 %v642
      %v857 = vpop.f32.mrb[0].mxu0
      %v858 = vadd.f32 %v537, %v857
      %v859 = vpop.f32.mrb[0].mxu0
      %860 = vmatprep.mubr.f32.mxu0 0.0
      %861 = vmatmul.mubr.f32.gmra.mrb[0].mxu0 %v645
      %v862 = vpop.f32.mrb[0].mxu0
      %v863 = vadd.f32 %v542, %v862
      %v864 = vpop.f32.mrb[0].mxu0
      %865 = vmatprep.mubr.f32.mxu0 0.0
      %866 = vmatmul.mubr.f32.gmra.mrb[0].mxu0 %v648
      %v867 = vpop.f32.mrb[0].mxu0
      %v868 = vadd.f32 %v547, %v867
      %v869 = vpop.f32.mrb[0].mxu0
      %870 = vmatprep.mubr.f32.mxu0 0.0
      %871 = vmatmul.mubr.f32.gmra.mrb[0].mxu0 %v651
      %v872 = vpop.f32.mrb[0].mxu0
      %v873 = vadd.f32 %v552, %v872
      %v874 = vpop.f32.mrb[0].mxu0
      %875 = vmatprep.mubr.f32.mxu0 0.0
      %876 = vmatmul.mubr.f32.gmra.mrb[0].mxu0 %v654
      %v877 = vpop.f32.mrb[0].mxu0
      %v878 = vadd.f32 %v557, %v877
      %v879 = vpop.f32.mrb[0].mxu0
      %880 = vdwg.mxu0
      %v881 = vmax.f32 %v723, 0.0
      %v882 = vmax.f32 %v728, 0.0
      %v883 = vmax.f32 %v733, 0.0
      %v884 = vmax.f32 %v738, 0.0
      %v885 = vmax.f32 %v743, 0.0
      %v886 = vmax.f32 %v748, 0.0
      %v887 = vmax.f32 %v753, 0.0
      %v888 = vmax.f32 %v758, 0.0
      %v889 = vmax.f32 %v763, 0.0
      %v890 = vmax.f32 %v768, 0.0
      %v891 = vmax.f32 %v773, 0.0
      %v892 = vmax.f32 %v778, 0.0
      %v893 = vmax.f32 %v783, 0.0
      %v894 = vmax.f32 %v788, 0.0
      %v895 = vmax.f32 %v793, 0.0
      %v896 = vmax.f32 %v798, 0.0
      %v897 = vmax.f32 %v803, 0.0
      %v898 = vmax.f32 %v808, 0.0
      %v899 = vmax.f32 %v813, 0.0
      %v900 = vmax.f32 %v818, 0.0
      %v901 = vmax.f32 %v823, 0.0
      %v902 = vmax.f32 %v828, 0.0
      %v903 = vmax.f32 %v833, 0.0
      %v904 = vmax.f32 %v838, 0.0
      %v905 = vmax.f32 %v843, 0.0
      %v906 = vmax.f32 %v848, 0.0
      %v907 = vmax.f32 %v853, 0.0
      %v908 = vmax.f32 %v858, 0.0
      %v909 = vmax.f32 %v863, 0.0
      %v910 = vmax.f32 %v868, 0.0
      %v911 = vmax.f32 %v873, 0.0
      %v912 = vmax.f32 %v878, 0.0
      %v913 = vld [vmem:[%s319] sm:$0xff]
      %v914 = vld [vmem:[%s319 + $0x8] sm:$0xff]
      %v915 = vld [vmem:[%s323] sm:$0xff]
      %917 = vset.pattern.permute.xlu0 0
      %918 = vperm.xlu0 %917, %v915
      %v919 = vpop.permute.xlu0 %918
      %921 = vmatprep.subr.mxu0 0.0
      %922 = vmatpush1.msra.mxu0 %v881
      %923 = vmatprep.subr.mxu0 0.0
      %924 = vmatpush1.msra.mxu0 %v882
      %925 = vmatprep.subr.mxu0 0.0
      %926 = vmatpush1.msra.mxu0 %v883
      %927 = vmatprep.subr.mxu0 0.0
      %928 = vmatpush1.msra.mxu0 %v884
      %929 = vmatprep.subr.mxu0 0.0
      %930 = vmatpush1.msra.mxu0 %v885
      %931 = vmatprep.subr.mxu0 0.0
      %932 = vmatpush1.msra.mxu0 %v886
      %933 = vmatprep.subr.mxu0 0.0
      %934 = vmatpush1.msra.mxu0 %v887
      %935 = vmatprep.subr.mxu0 0.0
      %936 = vmatpush1.msra.mxu0 %v888
      %937 = vmatprep.subr.mxu0 0.0
      %938 = vmatpush1.msra.mxu0 %v889
      %939 = vmatprep.subr.mxu0 0.0
      %940 = vmatpush1.msra.mxu0 %v890
      %941 = vmatprep.subr.mxu0 0.0
      %942 = vmatpush1.msra.mxu0 %v891
      %943 = vmatprep.subr.mxu0 0.0
      %944 = vmatpush1.msra.mxu0 %v892
      %945 = vmatprep.subr.mxu0 0.0
      %946 = vmatpush1.msra.mxu0 %v893
      %947 = vmatprep.subr.mxu0 0.0
      %948 = vmatpush1.msra.mxu0 %v894
      %949 = vmatprep.subr.mxu0 0.0
      %950 = vmatpush1.msra.mxu0 %v895
      %951 = vmatprep.subr.mxu0 0.0
      %952 = vmatpush1.msra.mxu0 %v896
      %953 = vmatprep.subr.mxu0 0.0
      %954 = vmatpush1.msra.mxu0 %v897
      %955 = vmatprep.subr.mxu0 0.0
      %956 = vmatpush1.msra.mxu0 %v898
      %957 = vmatprep.subr.mxu0 0.0
      %958 = vmatpush1.msra.mxu0 %v899
      %959 = vmatprep.subr.mxu0 0.0
      %960 = vmatpush1.msra.mxu0 %v900
      %961 = vmatprep.subr.mxu0 0.0
      %962 = vmatpush1.msra.mxu0 %v901
      %963 = vmatprep.subr.mxu0 0.0
      %964 = vmatpush1.msra.mxu0 %v902
      %965 = vmatprep.subr.mxu0 0.0
      %966 = vmatpush1.msra.mxu0 %v903
      %967 = vmatprep.subr.mxu0 0.0
      %968 = vmatpush1.msra.mxu0 %v904
      %969 = vmatprep.subr.mxu0 0.0
      %970 = vmatpush1.msra.mxu0 %v905
      %971 = vmatprep.subr.mxu0 0.0
      %972 = vmatpush1.msra.mxu0 %v906
      %973 = vmatprep.subr.mxu0 0.0
      %974 = vmatpush1.msra.mxu0 %v907
      %975 = vmatprep.subr.mxu0 0.0
      %976 = vmatpush1.msra.mxu0 %v908
      %977 = vmatprep.subr.mxu0 0.0
      %978 = vmatpush1.msra.mxu0 %v909
      %979 = vmatprep.subr.mxu0 0.0
      %980 = vmatpush1.msra.mxu0 %v910
      %981 = vmatprep.subr.mxu0 0.0
      %982 = vmatpush1.msra.mxu0 %v911
      %983 = vmatprep.subr.mxu0 0.0
      %984 = vmatpush1.msra.mxu0 %v912
      %985 = vmatprep.mubr.f32.mxu0 %v914
      %986 = vmatmul.mubr.f32.gmra.mrb[0].mxu0 %v913
      %v987 = vpop.f32.mrb[0].mxu0
      %v988 = vadd.f32 %v919, %v987
      %v989 = vpop.f32.mrb[0].mxu0
      %990 = vdwg.mxu0
      %vm991 = vcmask 64512
      %992 = vst.msk [vmem:[%s330] sm:$0xff] %vm991, %v988
      %p993 = scmp.lt.s32.totalorder %s20, 1
      %s994 = scalar_select %p993, %s20, 1
      %p995 = scmp.lt.s32.totalorder %s21, 0
      %s996 = scalar_select %p995, %s21, 0
      %s997 = sadd.s32 %s996, %s994
      %s998 = smul.addr %s997, 8
      %s999 = scalar_lea.vmem %s5, %s998
      // Predicated region
      $region41: #{rho_critic_forward.1} parent=39 // pred_check
        %p1000 = pneg %p180
      $region42: #{rho_critic_forward.1} parent=39 // pred_check_branch
        %1002 = sbr.rel (%p1000) target = $region44
      $region43: #{rho_critic_forward.1} parent=39 // pred_region
        _
      $region44: #{rho_critic_forward.1} parent=39 // pred_fallthru
        _
    $region40: #{rho_critic_forward.1} parent=5 // pred_fallthru
      _
    %p1003 = scmp.le.s32.totalorder 2, %s11
    // Predicated region
    $region45: #{rho_critic_forward.1} parent=5 // pred_check
      %p1004 = pneg %p1003
    $region46: #{rho_critic_forward.1} parent=5 // pred_check_branch
      %1006 = sbr.rel (%p1004) target = $region48
    $region47: #{rho_critic_forward.1} parent=5 // pred_region
      %s1007 = ssub.s32 %s11, 2
      // Predicated region
      $region49: #{rho_critic_forward.1} parent=47 // pred_check
        %p1008 = pneg %p186
      $region50: #{rho_critic_forward.1} parent=47 // pred_check_branch
        %1010 = sbr.rel (%p1008) target = $region52
      $region51: #{rho_critic_forward.1} parent=47 // pred_region
        %p1011 = scmp.lt.s32.totalorder %s22, 1
        %s1012 = scalar_select %p1011, %s22, 1
        %p1013 = scmp.lt.s32.totalorder %s23, 0
        %s1014 = scalar_select %p1013, %s23, 0
        %s1015 = sadd.s32 %s1014, %s1012
        %s1016 = smul.addr %s1015, 8
        %s1017 = scalar_lea.vmem %s5, %s1016
      $region52: #{rho_critic_forward.1} parent=47 // pred_fallthru
        _
    $region48: #{rho_critic_forward.1} parent=5 // pred_fallthru
      _
  $region6: #{rho_critic_forward.1} parent=0 // loop_footer
    %s15 = sadd.s32 1, %s11
  $region7: #{rho_critic_forward.1} parent=0 // loop_footer_branch
    %10 = sbr.rel target = $region3
  $region8: #{rho_critic_forward.1} parent=0 // loop_exit
    _

</llo_original>
